<compile_context>
chip_gen: v7x
topology: tpu7x:2x2x1
jax: 0.10.0
libtpu: 0.0.40
codegen_flags: <defaults>
</compile_context>

<pallas_src>
import numpy as np
import jax
import jax.numpy as jnp
from jax.experimental import pallas as pl
from jax.experimental.pallas import tpu as pltpu


def _round_up(x, m):
    return ((x + m - 1) // m) * m


def _cdiv(a, b):
    return -(-a // b)


def phi_kernel(const_ref, ixt_ref, iyt_ref, kt_ref, wx_ref, wy_ref, out_ref):
    """One batch tile of TB pairs; batch lives on the lane axis."""
    ixt = ixt_ref[...].astype(jnp.float32)   # (Np, TB) I_X, streamed as int8
    iyt = iyt_ref[...].astype(jnp.float32)   # (Np, TB) I_Y, streamed as int8
    kt = kt_ref[...]                         # (Np, Np) masked bilinear table, transposed
    wx = wx_ref[...]                         # (Np, 1)  fused linear weight for I_X
    wy = wy_ref[...]                         # (Np, 1)  fused linear weight for I_Y

    # Bilinear term: t[j, b] = sum_i K[i, j] * I_X[i, b]   (MXU)
    t = jnp.dot(kt, ixt, preferred_element_type=jnp.float32)          # (Np, TB)

    # Single fused multiply-add + ONE cross-sublane reduction:
    #   sum_i wx*Ix + sum_j (t + wy)*Iy  ==  lin + bil
    out_ref[...] = (jnp.sum(wx * ixt + (t + wy) * iyt, axis=0, keepdims=True)
                    + const_ref[0, 0])                                 # (1, TB) lane-dense


def ssb_forward(ix, iy, w, m, mask):
    """ix, iy: (B, N) 0/1 indicators. w: (N,). m: (4, N, N). mask: (N, N) strict upper."""
    f32 = jnp.float32
    B, N = ix.shape
    ix = jnp.asarray(ix, f32)
    iy = jnp.asarray(iy, f32)
    w = jnp.asarray(w, f32).reshape(N)
    m = jnp.asarray(m, f32)
    mask = jnp.asarray(mask, f32)

    # ---- batch-independent preprocessing (hoisted out of the kernel) ----
    # M[2a+b, i, j] = m00 + a*(m10-m00) + b*(m01-m00) + a*b*(m11-m10-m01+m00)
    m00, m01, m10, m11 = m[0], m[1], m[2], m[3]
    kt = ((m11 - m10 - m01 + m00) * mask).T                # (N, N)  K^T for kt @ ixt
    rowsum_d10 = jnp.sum((m10 - m00) * mask, axis=1)       # (N,)
    colsum_d01 = jnp.sum((m01 - m00) * mask, axis=0)       # (N,)
    const = jnp.sum(m00 * mask).reshape(1, 1)              # (1, 1) scalar -> SMEM
    wx = (w + rowsum_d10).reshape(N, 1)                    # multiplies I_X
    wy = (colsum_d01 - w).reshape(N, 1)                    # multiplies I_Y

    # Pad the attribute axis to a sublane multiple; padded rows are all-zero
    # (zero weights, zero K rows/cols, zero indicators) so they contribute 0.
    Np = _round_up(N, 8)
    ktp = jnp.zeros((Np, Np), f32).at[:N, :N].set(kt)
    wxp = jnp.zeros((Np, 1), f32).at[:N, :].set(wx)
    wyp = jnp.zeros((Np, 1), f32).at[:N, :].set(wy)

    # ---- batch-tile sizing from N and a VMEM budget --------------------
    # Per batch column: int8 streams (2 streams x 2 buffers x Np) plus ~6
    # f32 (Np, TB) in-kernel intermediates -> ~28*Np bytes/column.
    B128 = _round_up(B, 128)
    nb = B128 // 128
    stream_budget = 6 << 20                                # ~6 MiB, safe on all gens
    tb_budget = max(128, ((stream_budget // (28 * Np)) // 128) * 128)
    cap_d = max(1, tb_budget // 128)
    steps = max(1, _cdiv(nb, cap_d))
    if nb >= 2:
        steps = max(steps, 2)                              # >=2 parallel steps (v7x megacore)
    d = _cdiv(nb, steps)                                   # minimal padding for that step count
    TB = 128 * d
    Bp = TB * steps

    # int8 indicator streams, batch on the lane axis (bit-exact for 0/1).
    ixt = jnp.zeros((Np, Bp), jnp.int8).at[:N, :B].set(ix.T.astype(jnp.int8))
    iyt = jnp.zeros((Np, Bp), jnp.int8).at[:N, :B].set(iy.T.astype(jnp.int8))

    grid = (Bp // TB,)

    cost = pl.CostEstimate(
        flops=int(2 * Bp * Np * Np + 6 * Bp * Np),
        transcendentals=0,
        bytes_accessed=int(2 * Np * Bp + 4 * (Np * Np + 2 * Np + Bp) + 4),
    )
    vmem_bytes = (
        2 * 2 * Np * TB                      # int8 indicator streams, double-buffered
        + 2 * (Np * Np + 2 * Np) * 4         # K^T, wx, wy (f32), double-buffered
        + 2 * TB * 4                         # output tile, double-buffered
        + 6 * Np * TB * 4                    # in-kernel f32 intermediates
        + (2 << 20)                          # slack
    )
    vmem_bytes = int(min(max(vmem_bytes, 4 << 20), 32 << 20))

    out = pl.pallas_call(
        phi_kernel,
        out_shape=jax.ShapeDtypeStruct((1, Bp), f32),
        grid=grid,
        in_specs=[
            pl.BlockSpec(memory_space=pltpu.MemorySpace.SMEM),     # const (1,1) scalar
            pl.BlockSpec((Np, TB), lambda b: (0, b)),              # I_X int8 tile (streamed)
            pl.BlockSpec((Np, TB), lambda b: (0, b)),              # I_Y int8 tile (streamed)
            pl.BlockSpec((Np, Np), lambda b: (0, 0)),              # K^T (resident)
            pl.BlockSpec((Np, 1), lambda b: (0, 0)),               # wx (resident)
            pl.BlockSpec((Np, 1), lambda b: (0, 0)),               # wy (resident)
        ],
        out_specs=pl.BlockSpec((1, TB), lambda b: (0, b)),         # lane-dense output
        compiler_params=pltpu.CompilerParams(
            dimension_semantics=("parallel",),
            vmem_limit_bytes=vmem_bytes,
        ),
        cost_estimate=cost,
    )(const, ixt, iyt, ktp, wxp, wyp)

    return out[0, :B]


def build_indicators(theta, sparse_list):
    """I[b, i] = 1.0 iff every item of theta[i] is present in sparse_list[b]."""
    # TODO(synk): set-membership over Python lists has no tensor equivalent; host-side glue.
    B, N = len(sparse_list), len(theta)
    ind = np.zeros((B, N), dtype=np.float32)
    for b, s in enumerate(sparse_list):
        sset = set(s)
        for i, A in enumerate(theta):
            ind[b, i] = float(all(item in sset for item in A))
    return ind


def reference_forward(theta, w_np, m_np, sparse_X, sparse_Y):
    """Pure-Python replica of the torch loop semantics (additive + phi parts)."""
    n = len(theta)
    f = 0.0
    for i, S in enumerate(theta):
        if all(k in sparse_X for k in S):
            f += float(w_np[i])
        if all(k in sparse_Y for k in S):
            f -= float(w_np[i])
    for i in range(n):
        A = theta[i]
        for j in range(i + 1, n):
            B = theta[j]
            a = int(all(k in sparse_X for k in A))
            b = int(all(k in sparse_Y for k in B))
            f += float(m_np[2 * a + b, i, j])
    return f


if __name__ == "__main__":
    # Synthetic attribute set (theta): 8 attributes over a universe of 16 items.
    theta = [[0], [1], [2, 3], [4], [5, 6], [7], [8, 9, 10], [11]]
    N = len(theta)

    # Batch of 4 preference pairs (sparse_X, sparse_Y).
    R = [
        ([0, 2, 3, 5], [1, 4, 7]),
        ([1, 5, 6, 11], [0, 2]),
        ([8, 9, 10, 4], [2, 3, 5, 6]),
        ([7], [0, 1, 11]),
    ]
    B = len(R)

    # Deterministic parameter init (phi params packed as a (4, N, N) table,
    # indexed by 2*I_X + I_Y; randomized so the phi path is exercised).
    key = jax.random.PRNGKey(0)
    kw, km = jax.random.split(key)
    w = jax.random.normal(kw, (N,), dtype=jnp.float32)
    m = jax.random.normal(km, (4, N, N), dtype=jnp.float32) * 0.1

    mask = jnp.asarray(np.triu(np.ones((N, N), dtype=np.float32), k=1))

    ix = jnp.asarray(build_indicators(theta, [p[0] for p in R]))
    iy = jnp.asarray(build_indicators(theta, [p[1] for p in R]))

    f = ssb_forward(ix, iy, w, m, mask)
    f = jax.block_until_ready(f)

    # Verify against the loop-based reference (torch forward semantics).
    w_np = np.asarray(w)
    m_np = np.asarray(m)
    ref = np.array([reference_forward(theta, w_np, m_np, sx, sy) for sx, sy in R],
                   dtype=np.float32)
    assert np.allclose(np.asarray(f), ref, rtol=1e-5, atol=1e-5), (f, ref)

    print("KERNEL_OK")
</pallas_src>

<mosaic_0001>
module attributes {stable_mosaic.version = 11 : i64} {
  func.func @phi_kernel(%arg0: i32, %arg1: memref<1x1xf32, #tpu.memory_space<smem>>, %arg2: memref<8x128xi8, #tpu.memory_space<vmem>>, %arg3: memref<8x128xi8, #tpu.memory_space<vmem>>, %arg4: memref<8x8xf32, #tpu.memory_space<vmem>>, %arg5: memref<8x1xf32, #tpu.memory_space<vmem>>, %arg6: memref<8x1xf32, #tpu.memory_space<vmem>>, %arg7: memref<1x128xf32, #tpu.memory_space<vmem>>) attributes {dimension_semantics = [#tpu.dimension_semantics<parallel>], iteration_bounds = array<i64: 1>, scalar_prefetch = 0 : i64, scratch_operands = 0 : i64, tpu.core_type = #tpu.core_type<tc>, window_params = [{transform_indices = @transform_0, window_bounds = array<i64: 1, 1>}, {transform_indices = @transform_1, window_bounds = array<i64: 8, 128>}, {transform_indices = @transform_2, window_bounds = array<i64: 8, 128>}, {pipeline_mode = #tpu.pipeline_mode<synchronous>, transform_indices = @transform_3, window_bounds = array<i64: 8, 8>}, {pipeline_mode = #tpu.pipeline_mode<synchronous>, transform_indices = @transform_4, window_bounds = array<i64: 8, 1>}, {pipeline_mode = #tpu.pipeline_mode<synchronous>, transform_indices = @transform_5, window_bounds = array<i64: 8, 1>}, {transform_indices = @transform_6, window_bounds = array<i64: 1, 128>}]} {
    %c0 = arith.constant 0 : index
    %c0_0 = arith.constant 0 : index
    %0 = vector.load %arg2[%c0, %c0_0] : memref<8x128xi8, #tpu.memory_space<vmem>>, vector<8x128xi8>
    %1 = arith.sitofp %0 : vector<8x128xi8> to vector<8x128xf32>
    %c0_1 = arith.constant 0 : index
    %c0_2 = arith.constant 0 : index
    %2 = vector.load %arg3[%c0_1, %c0_2] : memref<8x128xi8, #tpu.memory_space<vmem>>, vector<8x128xi8>
    %3 = arith.sitofp %2 : vector<8x128xi8> to vector<8x128xf32>
    %c0_3 = arith.constant 0 : index
    %c0_4 = arith.constant 0 : index
    %4 = vector.load %arg4[%c0_3, %c0_4] : memref<8x8xf32, #tpu.memory_space<vmem>>, vector<8x8xf32>
    %c0_5 = arith.constant 0 : index
    %c0_6 = arith.constant 0 : index
    %5 = vector.load %arg5[%c0_5, %c0_6] : memref<8x1xf32, #tpu.memory_space<vmem>>, vector<8x1xf32>
    %c0_7 = arith.constant 0 : index
    %c0_8 = arith.constant 0 : index
    %6 = vector.load %arg6[%c0_7, %c0_8] : memref<8x1xf32, #tpu.memory_space<vmem>>, vector<8x1xf32>
    %cst = arith.constant dense<0.000000e+00> : vector<8x128xf32>
    %7 = tpu.matmul %4, %1, %cst {dimension_numbers = #tpu.dot_dimension_numbers<[1], [0], [0], [1], [0, 0, 1, 1], [], []>} : vector<8x8xf32>, vector<8x128xf32>, vector<8x128xf32> -> vector<8x128xf32>
    %8 = vector.broadcast %5 : vector<8x1xf32> to vector<8x128xf32>
    %9 = arith.mulf %8, %1 : vector<8x128xf32>
    %10 = vector.broadcast %6 : vector<8x1xf32> to vector<8x128xf32>
    %11 = arith.addf %7, %10 : vector<8x128xf32>
    %12 = arith.mulf %11, %3 : vector<8x128xf32>
    %13 = arith.addf %9, %12 : vector<8x128xf32>
    %cst_9 = arith.constant dense<0.000000e+00> : vector<128xf32>
    %14 = vector.multi_reduction <add>, %13, %cst_9 [0] : vector<8x128xf32> to vector<128xf32>
    %15 = vector.shape_cast %14 : vector<128xf32> to vector<1x128xf32>
    %c0_10 = arith.constant 0 : index
    %c0_11 = arith.constant 0 : index
    %16 = memref.load %arg1[%c0_10, %c0_11] : memref<1x1xf32, #tpu.memory_space<smem>>
    %17 = vector.broadcast %16 : f32 to vector<1x128xf32>
    %18 = arith.addf %15, %17 : vector<1x128xf32>
    %c0_12 = arith.constant 0 : index
    %c0_13 = arith.constant 0 : index
    %19 = vector.load %arg7[%c0_12, %c0_13] : memref<1x128xf32, #tpu.memory_space<vmem>>, vector<1x128xf32>
    tpu.vector_store %arg7[%c0_12, %c0_13], %18 {strides = array<i32>} : memref<1x128xf32, #tpu.memory_space<vmem>>, vector<1x128xf32>,
    return
  }
  func.func @transform_0(%arg0: i32) -> (i32, i32) {
    %c0_i32 = arith.constant 0 : i32
    %c0_i32_0 = arith.constant 0 : i32
    %c0_i32_1 = arith.constant 0 : i32
    return %c0_i32, %c0_i32_0 : i32, i32
  }
  func.func @transform_1(%arg0: i32) -> (i32, i32) {
    %c0_i32 = arith.constant 0 : i32
    %c0_i32_0 = arith.constant 0 : i32
    return %c0_i32, %arg0 : i32, i32
  }
  func.func @transform_2(%arg0: i32) -> (i32, i32) {
    %c0_i32 = arith.constant 0 : i32
    %c0_i32_0 = arith.constant 0 : i32
    return %c0_i32, %arg0 : i32, i32
  }
  func.func @transform_3(%arg0: i32) -> (i32, i32) {
    %c0_i32 = arith.constant 0 : i32
    %c0_i32_0 = arith.constant 0 : i32
    %c0_i32_1 = arith.constant 0 : i32
    return %c0_i32, %c0_i32_0 : i32, i32
  }
  func.func @transform_4(%arg0: i32) -> (i32, i32) {
    %c0_i32 = arith.constant 0 : i32
    %c0_i32_0 = arith.constant 0 : i32
    %c0_i32_1 = arith.constant 0 : i32
    return %c0_i32, %c0_i32_0 : i32, i32
  }
  func.func @transform_5(%arg0: i32) -> (i32, i32) {
    %c0_i32 = arith.constant 0 : i32
    %c0_i32_0 = arith.constant 0 : i32
    %c0_i32_1 = arith.constant 0 : i32
    return %c0_i32, %c0_i32_0 : i32, i32
  }
  func.func @transform_6(%arg0: i32) -> (i32, i32) {
    %c0_i32 = arith.constant 0 : i32
    %c0_i32_0 = arith.constant 0 : i32
    return %c0_i32, %arg0 : i32, i32
  }
}

</mosaic_0001>

<llo_original>
// kernel: tpu_custom_call.1
$region0: #{tpu_custom_call.1}
  #allocation0 [shape = 'u32[]', space=smem, size = 0x4, offset = 0x4, fixed_abs, tag = 'smem constant byte address 0x4 - core index']
  #allocation1 [shape = 'u32[144,128]{1,0:T(1,128)}', space=vmem, size = 0x12000, scoped, tag = 'internal scratch']
  #allocation2 [shape = 'f32[1,1]{1,0:T(1,128)S(6)}', space=smem, size = 0x200, scoped, tag = 'scoped memory for tpu_custom_call.1']
  %s0 = inlined_call_operand.<no memory space> [shape: f32[1,1], index: 0, kind: input, shape index: {}]
  %s1 = inlined_call_operand.vmem [shape: s8[8,128], index: 1, kind: input, shape index: {}]
  %s2 = inlined_call_operand.vmem [shape: s8[8,128], index: 2, kind: input, shape index: {}]
  %s3 = inlined_call_operand.vmem [shape: f32[8,8], index: 3, kind: input, shape index: {}]
  %s4 = inlined_call_operand.vmem [shape: f32[8,1], index: 4, kind: input, shape index: {}]
  %s5 = inlined_call_operand.vmem [shape: f32[8,1], index: 5, kind: input, shape index: {}]
  %s6 = inlined_call_operand.hbm [shape: f32[1,128], index: 6, kind: output, shape index: {}]
  %s7 = sld [smem:[#allocation0]]
  $region34: #{tpu_custom_call.1} parent=0
    _
  %s9 = ssub.s32 1, %s7
  %s10 = scalar_select 0, %s9, %s7
  %11 = sst [smem:[#allocation2]] %s0
  $region1: #{tpu_custom_call.1} parent=0
    #allocation3 [shape = 'u8[512]{0}', space=vmem, size = 0x400, scoped, tag = 'output window, operand 0, single buffered']
    #allocation4 [shape = 's32[1]{0}', space=sflag, size = 0x4, scoped, tag = 'scoped memory for tpu_custom_call.1']
    %12 = vsyncpa [#allocation4], 0
    // Predicated region
    $region2: #{tpu_custom_call.1} parent=1 // pred_check
      _
    $region3: #{tpu_custom_call.1} parent=1 // pred_check_branch
      %14 = sbr.rel (0) target = $region5
    $region4: #{tpu_custom_call.1} parent=1 // pred_region
      _
    $region5: #{tpu_custom_call.1} parent=1 // pred_fallthru
      _
    // Predicated region
    $region6: #{tpu_custom_call.1} parent=1 // pred_check
      _
    $region7: #{tpu_custom_call.1} parent=1 // pred_check_branch
      %16 = sbr.rel (0) target = $region9
    $region8: #{tpu_custom_call.1} parent=1 // pred_region
      _
    $region9: #{tpu_custom_call.1} parent=1 // pred_fallthru
      _
    // Predicated region
    $region10: #{tpu_custom_call.1} parent=1 // pred_check
      _
    $region11: #{tpu_custom_call.1} parent=1 // pred_check_branch
      %18 = sbr.rel (0) target = $region13
    $region12: #{tpu_custom_call.1} parent=1 // pred_region
      _
    $region13: #{tpu_custom_call.1} parent=1 // pred_fallthru
      _
    // Predicated region
    $region14: #{tpu_custom_call.1} parent=1 // pred_check
      _
    $region15: #{tpu_custom_call.1} parent=1 // pred_check_branch
      %20 = sbr.rel (0) target = $region17
    $region16: #{tpu_custom_call.1} parent=1 // pred_region
      _
    $region17: #{tpu_custom_call.1} parent=1 // pred_fallthru
      _
    // Predicated region
    $region18: #{tpu_custom_call.1} parent=1 // pred_check
      _
    $region19: #{tpu_custom_call.1} parent=1 // pred_check_branch
      %22 = sbr.rel (0) target = $region21
    $region20: #{tpu_custom_call.1} parent=1 // pred_region
      _
    $region21: #{tpu_custom_call.1} parent=1 // pred_fallthru
      _
    // Predicated region
    $region22: #{tpu_custom_call.1} parent=1 // pred_check
      _
    $region23: #{tpu_custom_call.1} parent=1 // pred_check_branch
      %24 = sbr.rel (0) target = $region25
    $region24: #{tpu_custom_call.1} parent=1 // pred_region
      _
    $region25: #{tpu_custom_call.1} parent=1 // pred_fallthru
      _
    %v25 = vld [vmem:[%s1] sm:$0x3]
    %v26 = vunpack.c.0.s8 %v25
    %v27 = vcvt.s32.f32 %v26
    %v28 = vld [vmem:[%s2] sm:$0x3]
    %v29 = vunpack.c.0.s8 %v28
    %v30 = vcvt.s32.f32 %v29
    %v31 = vld [vmem:[%s3] sm:$0xff]
    %v32 = vld [vmem:[%s4] sm:$0xff]
    %v33 = vld [vmem:[%s5] sm:$0xff]
    %35 = vset.pattern.permute.xlu0 0
    %36 = vperm.xlu0 %35, %v32
    %v37 = vpop.permute.xlu0 %36
    %v39 = vmul.f32 %v37, %v27
    %41 = vset.pattern.permute.xlu0 0
    %42 = vperm.xlu0 %41, %v33
    %v43 = vpop.permute.xlu0 %42
    %vm45 = vcmask 64512
    %v47 = vsel %vm45, %v31, 0
    %49 = vmatprep.subr.mxu0 0.0
    %50 = vmatpush1.msra.mxu0 %v27
    %51 = vmatprep.subr.mxu0 0.0
    %52 = vmatpush1.msra.mxu0 0.0
    %53 = vmatprep.subr.mxu0 0.0
    %54 = vmatpush1.msra.mxu0 0.0
    %55 = vmatprep.subr.mxu0 0.0
    %56 = vmatpush1.msra.mxu0 0.0
    %57 = vmatprep.subr.mxu0 0.0
    %58 = vmatpush1.msra.mxu0 0.0
    %59 = vmatprep.subr.mxu0 0.0
    %60 = vmatpush1.msra.mxu0 0.0
    %61 = vmatprep.subr.mxu0 0.0
    %62 = vmatpush1.msra.mxu0 0.0
    %63 = vmatprep.subr.mxu0 0.0
    %64 = vmatpush1.msra.mxu0 0.0
    %65 = vmatprep.subr.mxu0 0.0
    %66 = vmatpush1.msra.mxu0 0.0
    %67 = vmatprep.subr.mxu0 0.0
    %68 = vmatpush1.msra.mxu0 0.0
    %69 = vmatprep.subr.mxu0 0.0
    %70 = vmatpush1.msra.mxu0 0.0
    %71 = vmatprep.subr.mxu0 0.0
    %72 = vmatpush1.msra.mxu0 0.0
    %73 = vmatprep.subr.mxu0 0.0
    %74 = vmatpush1.msra.mxu0 0.0
    %75 = vmatprep.subr.mxu0 0.0
    %76 = vmatpush1.msra.mxu0 0.0
    %77 = vmatprep.subr.mxu0 0.0
    %78 = vmatpush1.msra.mxu0 0.0
    %79 = vmatprep.subr.mxu0 0.0
    %80 = vmatpush1.msra.mxu0 0.0
    %81 = vmatprep.subr.mxu0 0.0
    %82 = vmatpush1.msra.mxu0 0.0
    %83 = vmatprep.subr.mxu0 0.0
    %84 = vmatpush1.msra.mxu0 0.0
    %85 = vmatprep.subr.mxu0 0.0
    %86 = vmatpush1.msra.mxu0 0.0
    %87 = vmatprep.subr.mxu0 0.0
    %88 = vmatpush1.msra.mxu0 0.0
    %89 = vmatprep.subr.mxu0 0.0
    %90 = vmatpush1.msra.mxu0 0.0
    %91 = vmatprep.subr.mxu0 0.0
    %92 = vmatpush1.msra.mxu0 0.0
    %93 = vmatprep.subr.mxu0 0.0
    %94 = vmatpush1.msra.mxu0 0.0
    %95 = vmatprep.subr.mxu0 0.0
    %96 = vmatpush1.msra.mxu0 0.0
    %97 = vmatprep.subr.mxu0 0.0
    %98 = vmatpush1.msra.mxu0 0.0
    %99 = vmatprep.subr.mxu0 0.0
    %100 = vmatpush1.msra.mxu0 0.0
    %101 = vmatprep.subr.mxu0 0.0
    %102 = vmatpush1.msra.mxu0 0.0
    %103 = vmatprep.subr.mxu0 0.0
    %104 = vmatpush1.msra.mxu0 0.0
    %105 = vmatprep.subr.mxu0 0.0
    %106 = vmatpush1.msra.mxu0 0.0
    %107 = vmatprep.subr.mxu0 0.0
    %108 = vmatpush1.msra.mxu0 0.0
    %109 = vmatprep.subr.mxu0 0.0
    %110 = vmatpush1.msra.mxu0 0.0
    %111 = vmatprep.subr.mxu0 0.0
    %112 = vmatpush1.msra.mxu0 0.0
    %113 = vmatprep.mubr.f32.mxu0 0.0
    %114 = vmatmul.mubr.f32.gmra.mrb[0].mxu0 %v47
    %v115 = vpop.f32.mrb[0].mxu0
    %v116 = vadd.f32 %v43, %v115
    %v117 = vpop.f32.mrb[0].mxu0
    %118 = vdwg.mxu0
    %v119 = vmul.f32 %v116, %v30
    %v120 = vadd.f32 %v39, %v119
    %v121 = vrot.slane %v120, 4
    %v122 = vadd.f32 %v120, %v121
    %v123 = vrot.slane %v122, 2
    %v124 = vadd.f32 %v122, %v123
    %v125 = vrot.slane %v124, 1
    %v126 = vadd.f32 %v124, %v125
    %s127 = sld [smem:[#allocation2]]
    %v128 = vstv %s127
    %v129 = vadd.f32 %v126, %v128
    %130 = vst [vmem:[#allocation3] sm:$0x1] %v129
    // Predicated region
    $region26: #{tpu_custom_call.1} parent=1 // pred_check
      _
    $region27: #{tpu_custom_call.1} parent=1 // pred_check_branch
      %132 = sbr.rel (0) target = $region29
    $region28: #{tpu_custom_call.1} parent=1 // pred_region
      %s134 = ssub.s32 16, 16
      %135 = vsyncadd [#allocation4], %s134
      %s137 = sshll.u32 [#allocation3], 4
      %s138 = int_to_ptr.vmem [resolvable:$true] %s137
      %140 = dma.vmem_to_hbm [thread:$0]  %s138, 16, %s6, [#allocation4]
    $region29: #{tpu_custom_call.1} parent=1 // pred_fallthru
      _
    // Predicated region
    $region30: #{tpu_custom_call.1} parent=1 // pred_check
      _
    $region31: #{tpu_custom_call.1} parent=1 // pred_check_branch
      %142 = sbr.rel (0) target = $region33
    $region32: #{tpu_custom_call.1} parent=1 // pred_region
      %143 = dma.done [#allocation4], 16
    $region33: #{tpu_custom_call.1} parent=1 // pred_fallthru
      _
    %144 = vsyncpa [#allocation4], 1

</llo_original>
